<compile_context>
chip_gen: v7x
topology: tpu7x:2x2x1
jax: 0.10.0
libtpu: 0.0.40
codegen_flags: <defaults>
</compile_context>

<pallas_src>
import math

import jax
import jax.numpy as jnp
from jax.experimental import pallas as pl
from jax.experimental.pallas import tpu as pltpu

LMAX = 2
SH_DIM = (LMAX + 1) ** 2  # 9
_EPS = 1e-12
_SQRT3 = math.sqrt(3.0)
_SQRT5 = math.sqrt(5.0)
_LANES = 128
_SUBLANES = 8
# 12 MiB double-buffered (in+out) at 1024 rows -> fits every generation's
# default scoped-VMEM limit; returns past ~512-1024 rows are <5% anyway.
_MAX_TILE_ROWS = 1024


def _round_up(a: int, b: int) -> int:
    return -(-a // b) * b


def _sh_kernel(v_ref, o_ref):
    """v_ref: (3, tr, 128) edge vectors, o_ref: (9, tr, 128) spherical harmonics."""
    x = v_ref[0]  # (tr, 128), dense sublanes + lanes
    y = v_ref[1]
    z = v_ref[2]

    # --- normalize (torch.nn.functional.normalize, eps=1e-12) via one rsqrt ---
    inv = jax.lax.rsqrt(jnp.maximum(x * x + y * y + z * z, _EPS * _EPS))
    x = x * inv
    y = y * inv
    z = z * inv

    x2 = x * x
    y2 = y * y
    z2 = z * z

    # --- e3nn real spherical harmonics, 'component' normalization ---
    # l = 0
    o_ref[0] = jnp.ones_like(x)
    # l = 1  (raw = (x, y, z), component scale sqrt(3))
    o_ref[1] = _SQRT3 * x
    o_ref[2] = _SQRT3 * y
    o_ref[3] = _SQRT3 * z
    # l = 2  (raw 'norm' polynomials, component scale sqrt(5))
    o_ref[4] = (_SQRT5 * _SQRT3) * (x * z)
    o_ref[5] = (_SQRT5 * _SQRT3) * (x * y)
    o_ref[6] = _SQRT5 * (y2 - 0.5 * (x2 + z2))
    o_ref[7] = (_SQRT5 * _SQRT3) * (y * z)
    o_ref[8] = (_SQRT5 * _SQRT3 * 0.5) * (z2 - x2)


def spherical_harmonic_edge_attrs_cm(
    edge_vec_cm: jax.Array, *, tile_rows: int = 512, trim: bool = True
) -> jax.Array:
    """Channel-major fast path: edge_vec_cm [3, E] f32 -> edge_sh [9, E] f32.

    tile_rows: sublane rows (of 128 edges) per grid step; clamped to a multiple
      of 8 in [8, 1024] so double-buffered in+out always fits default VMEM.
    trim: if False, return the padded [9, ceil(E/128)*128] slab (no slice copy);
      columns >= E may contain garbage/NaN from the partial last block.
    """
    c, e = edge_vec_cm.shape
    assert c == 3

    # Rows of 128 edges.  No rounding to whole tiles: the last grid block may
    # be partial (Pallas masks the out-of-bounds block reads/writes).
    rows = pl.cdiv(e, _LANES)
    e_pad = rows * _LANES

    tile_rows = max(_SUBLANES, min(int(tile_rows), _MAX_TILE_ROWS))
    tr = min(tile_rows, _round_up(rows, _SUBLANES))
    if rows >= 2 * _SUBLANES:
        # Keep the 'parallel' grid >= 2 steps so v7x's two TensorCores both
        # get work (costs at most one extra ~0.35us step on v5e/v6e).
        tr = min(tr, _round_up(pl.cdiv(rows, 2), _SUBLANES))
    tr = max(_SUBLANES, (tr // _SUBLANES) * _SUBLANES)
    grid = pl.cdiv(rows, tr)

    v = edge_vec_cm.astype(jnp.float32)
    if e_pad != e:
        # Only the E % 128 != 0 case pays this full-copy pad; zero padding is
        # safe (eps path maps zero vectors to finite output).
        v = jnp.pad(v, ((0, 0), (0, e_pad - e)))
    v3 = v.reshape(3, rows, _LANES)  # contiguous reshape: no data movement

    out = pl.pallas_call(
        _sh_kernel,
        out_shape=jax.ShapeDtypeStruct((SH_DIM, rows, _LANES), jnp.float32),
        grid_spec=pltpu.PrefetchScalarGridSpec(
            num_scalar_prefetch=0,
            grid=(grid,),
            in_specs=[pl.BlockSpec((3, tr, _LANES), lambda i: (0, i, 0))],
            out_specs=pl.BlockSpec((SH_DIM, tr, _LANES), lambda i: (0, i, 0)),
        ),
        compiler_params=pltpu.CompilerParams(dimension_semantics=("parallel",)),
    )(v3)

    out = out.reshape(SH_DIM, e_pad)  # contiguous reshape: no data movement
    if trim and e_pad != e:
        out = out[:, :e]  # fuses into the consumer under jit; copies if eager
    return out


def spherical_harmonic_edge_attrs(edge_vec: jax.Array, *, tile_rows: int = 512) -> jax.Array:
    """PyTorch-convention wrapper: edge_vec [E, 3] -> edge_sh [E, 9].

    The two boundary transposes cost ~2-3x the kernel's own HBM traffic; in a
    real model keep edge data channel-major and call the *_cm entry point (or
    fuse the SH evaluation into the consumer kernel and skip the HBM write).
    """
    out_cm = spherical_harmonic_edge_attrs_cm(edge_vec.T, tile_rows=tile_rows, trim=True)
    return out_cm.T


def _reference_sh(edge_vec: jnp.ndarray) -> jnp.ndarray:
    """Pure-JAX reference (same e3nn semantics) for correctness check."""
    n = jnp.linalg.norm(edge_vec, axis=-1, keepdims=True)
    v = edge_vec / jnp.maximum(n, _EPS)
    x, y, z = v[:, 0], v[:, 1], v[:, 2]
    cols = [
        jnp.ones_like(x),
        _SQRT3 * x,
        _SQRT3 * y,
        _SQRT3 * z,
        _SQRT5 * _SQRT3 * x * z,
        _SQRT5 * _SQRT3 * x * y,
        _SQRT5 * (y * y - 0.5 * (x * x + z * z)),
        _SQRT5 * _SQRT3 * y * z,
        _SQRT5 * (_SQRT3 / 2.0) * (z * z - x * x),
    ]
    return jnp.stack(cols, axis=-1)


if __name__ == "__main__":
    key = jax.random.PRNGKey(0)
    k0, k1 = jax.random.split(key)

    # Case 1: E not a multiple of 128 -> exercises input pad + partial last
    # grid block (rows=24, tr capped to 16 -> grid=2 with a partial step).
    E = 3000
    edge_vec = jax.random.normal(k0, (E, 3), dtype=jnp.float32)
    edge_vec = edge_vec.at[0].set(0.0)  # zero-length edge -> eps path
    ref = _reference_sh(edge_vec)

    edge_vec_cm = edge_vec.T  # [3, E]
    sh_cm = jax.block_until_ready(spherical_harmonic_edge_attrs_cm(edge_vec_cm))
    assert sh_cm.shape == (SH_DIM, E)
    assert jnp.allclose(sh_cm.T, ref, atol=1e-5, rtol=1e-5), "channel-major mismatch"

    # Padded (trim=False) contract: valid columns must still match.
    sh_pad = jax.block_until_ready(
        spherical_harmonic_edge_attrs_cm(edge_vec_cm, trim=False)
    )
    assert sh_pad.shape == (SH_DIM, _round_up(E, _LANES))
    assert jnp.allclose(sh_pad[:, :E].T, ref, atol=1e-5, rtol=1e-5), "padded-contract mismatch"

    # Small tile -> multi-step pipelined 'parallel' grid.
    sh_small = jax.block_until_ready(
        spherical_harmonic_edge_attrs_cm(edge_vec_cm, tile_rows=8)
    )
    assert jnp.allclose(sh_small.T, ref, atol=1e-5, rtol=1e-5), "multi-tile mismatch"

    # Case 2: 128-aligned E -> no pad, no slice, exact 2-step grid.
    E2 = 2048
    edge_vec2 = jax.random.normal(k1, (E2, 3), dtype=jnp.float32)
    ref2 = _reference_sh(edge_vec2)
    sh2 = jax.block_until_ready(spherical_harmonic_edge_attrs_cm(edge_vec2.T))
    assert sh2.shape == (SH_DIM, E2)
    assert jnp.allclose(sh2.T, ref2, atol=1e-5, rtol=1e-5), "aligned-case mismatch"

    # PyTorch-convention wrapper ([E, 3] -> [E, 9]), API-fidelity path only.
    sh_rm = jax.block_until_ready(spherical_harmonic_edge_attrs(edge_vec))
    assert sh_rm.shape == (E, SH_DIM)
    assert jnp.allclose(sh_rm, ref, atol=1e-5, rtol=1e-5), "row-major wrapper mismatch"

    print("KERNEL_OK")
</pallas_src>

<mosaic_0001>
module attributes {stable_mosaic.version = 11 : i64} {
  func.func @_sh_kernel(%arg0: i32, %arg1: memref<3x16x128xf32, #tpu.memory_space<vmem>>, %arg2: memref<9x16x128xf32, #tpu.memory_space<vmem>>) attributes {dimension_semantics = [#tpu.dimension_semantics<parallel>], iteration_bounds = array<i64: 2>, scalar_prefetch = 0 : i64, scratch_operands = 0 : i64, tpu.core_type = #tpu.core_type<tc>, window_params = [{transform_indices = @transform_0, window_bounds = array<i64: 3, 16, 128>}, {transform_indices = @transform_1, window_bounds = array<i64: 9, 16, 128>}]} {
    %c0 = arith.constant 0 : index
    %c0_0 = arith.constant 0 : index
    %c0_1 = arith.constant 0 : index
    %0 = vector.load %arg1[%c0, %c0_0, %c0_1] : memref<3x16x128xf32, #tpu.memory_space<vmem>>, vector<1x16x128xf32>
    %1 = vector.shape_cast %0 : vector<1x16x128xf32> to vector<16x128xf32>
    %c1 = arith.constant 1 : index
    %c0_2 = arith.constant 0 : index
    %c0_3 = arith.constant 0 : index
    %2 = vector.load %arg1[%c1, %c0_2, %c0_3] : memref<3x16x128xf32, #tpu.memory_space<vmem>>, vector<1x16x128xf32>
    %3 = vector.shape_cast %2 : vector<1x16x128xf32> to vector<16x128xf32>
    %c2 = arith.constant 2 : index
    %c0_4 = arith.constant 0 : index
    %c0_5 = arith.constant 0 : index
    %4 = vector.load %arg1[%c2, %c0_4, %c0_5] : memref<3x16x128xf32, #tpu.memory_space<vmem>>, vector<1x16x128xf32>
    %5 = vector.shape_cast %4 : vector<1x16x128xf32> to vector<16x128xf32>
    %6 = arith.mulf %1, %1 : vector<16x128xf32>
    %7 = arith.mulf %3, %3 : vector<16x128xf32>
    %8 = arith.addf %6, %7 : vector<16x128xf32>
    %9 = arith.mulf %5, %5 : vector<16x128xf32>
    %10 = arith.addf %8, %9 : vector<16x128xf32>
    %cst = arith.constant 1.000000e-24 : f32
    %11 = vector.broadcast %cst : f32 to vector<16x128xf32>
    %12 = arith.maximumf %10, %11 : vector<16x128xf32>
    %13 = math.rsqrt %12 : vector<16x128xf32>
    %14 = arith.mulf %1, %13 : vector<16x128xf32>
    %15 = arith.mulf %3, %13 : vector<16x128xf32>
    %16 = arith.mulf %5, %13 : vector<16x128xf32>
    %17 = arith.mulf %14, %14 : vector<16x128xf32>
    %18 = arith.mulf %15, %15 : vector<16x128xf32>
    %19 = arith.mulf %16, %16 : vector<16x128xf32>
    %cst_6 = arith.constant 1.000000e+00 : f32
    %20 = vector.broadcast %cst_6 : f32 to vector<16x128xf32>
    %c0_7 = arith.constant 0 : index
    %c0_8 = arith.constant 0 : index
    %c0_9 = arith.constant 0 : index
    %21 = vector.load %arg2[%c0_7, %c0_8, %c0_9] : memref<9x16x128xf32, #tpu.memory_space<vmem>>, vector<1x16x128xf32>
    %22 = vector.shape_cast %21 : vector<1x16x128xf32> to vector<16x128xf32>
    %23 = vector.shape_cast %20 : vector<16x128xf32> to vector<1x16x128xf32>
    tpu.vector_store %arg2[%c0_7, %c0_8, %c0_9], %23 {strides = array<i32>} : memref<9x16x128xf32, #tpu.memory_space<vmem>>, vector<1x16x128xf32>,
    %cst_10 = arith.constant 1.73205078 : f32
    %24 = vector.broadcast %cst_10 : f32 to vector<16x128xf32>
    %25 = arith.mulf %24, %14 : vector<16x128xf32>
    %c1_11 = arith.constant 1 : index
    %c0_12 = arith.constant 0 : index
    %c0_13 = arith.constant 0 : index
    %26 = vector.load %arg2[%c1_11, %c0_12, %c0_13] : memref<9x16x128xf32, #tpu.memory_space<vmem>>, vector<1x16x128xf32>
    %27 = vector.shape_cast %26 : vector<1x16x128xf32> to vector<16x128xf32>
    %28 = vector.shape_cast %25 : vector<16x128xf32> to vector<1x16x128xf32>
    tpu.vector_store %arg2[%c1_11, %c0_12, %c0_13], %28 {strides = array<i32>} : memref<9x16x128xf32, #tpu.memory_space<vmem>>, vector<1x16x128xf32>,
    %cst_14 = arith.constant 1.73205078 : f32
    %29 = vector.broadcast %cst_14 : f32 to vector<16x128xf32>
    %30 = arith.mulf %29, %15 : vector<16x128xf32>
    %c2_15 = arith.constant 2 : index
    %c0_16 = arith.constant 0 : index
    %c0_17 = arith.constant 0 : index
    %31 = vector.load %arg2[%c2_15, %c0_16, %c0_17] : memref<9x16x128xf32, #tpu.memory_space<vmem>>, vector<1x16x128xf32>
    %32 = vector.shape_cast %31 : vector<1x16x128xf32> to vector<16x128xf32>
    %33 = vector.shape_cast %30 : vector<16x128xf32> to vector<1x16x128xf32>
    tpu.vector_store %arg2[%c2_15, %c0_16, %c0_17], %33 {strides = array<i32>} : memref<9x16x128xf32, #tpu.memory_space<vmem>>, vector<1x16x128xf32>,
    %cst_18 = arith.constant 1.73205078 : f32
    %34 = vector.broadcast %cst_18 : f32 to vector<16x128xf32>
    %35 = arith.mulf %34, %16 : vector<16x128xf32>
    %c3 = arith.constant 3 : index
    %c0_19 = arith.constant 0 : index
    %c0_20 = arith.constant 0 : index
    %36 = vector.load %arg2[%c3, %c0_19, %c0_20] : memref<9x16x128xf32, #tpu.memory_space<vmem>>, vector<1x16x128xf32>
    %37 = vector.shape_cast %36 : vector<1x16x128xf32> to vector<16x128xf32>
    %38 = vector.shape_cast %35 : vector<16x128xf32> to vector<1x16x128xf32>
    tpu.vector_store %arg2[%c3, %c0_19, %c0_20], %38 {strides = array<i32>} : memref<9x16x128xf32, #tpu.memory_space<vmem>>, vector<1x16x128xf32>,
    %39 = arith.mulf %14, %16 : vector<16x128xf32>
    %cst_21 = arith.constant 3.87298346 : f32
    %40 = vector.broadcast %cst_21 : f32 to vector<16x128xf32>
    %41 = arith.mulf %40, %39 : vector<16x128xf32>
    %c4 = arith.constant 4 : index
    %c0_22 = arith.constant 0 : index
    %c0_23 = arith.constant 0 : index
    %42 = vector.load %arg2[%c4, %c0_22, %c0_23] : memref<9x16x128xf32, #tpu.memory_space<vmem>>, vector<1x16x128xf32>
    %43 = vector.shape_cast %42 : vector<1x16x128xf32> to vector<16x128xf32>
    %44 = vector.shape_cast %41 : vector<16x128xf32> to vector<1x16x128xf32>
    tpu.vector_store %arg2[%c4, %c0_22, %c0_23], %44 {strides = array<i32>} : memref<9x16x128xf32, #tpu.memory_space<vmem>>, vector<1x16x128xf32>,
    %45 = arith.mulf %14, %15 : vector<16x128xf32>
    %cst_24 = arith.constant 3.87298346 : f32
    %46 = vector.broadcast %cst_24 : f32 to vector<16x128xf32>
    %47 = arith.mulf %46, %45 : vector<16x128xf32>
    %c5 = arith.constant 5 : index
    %c0_25 = arith.constant 0 : index
    %c0_26 = arith.constant 0 : index
    %48 = vector.load %arg2[%c5, %c0_25, %c0_26] : memref<9x16x128xf32, #tpu.memory_space<vmem>>, vector<1x16x128xf32>
    %49 = vector.shape_cast %48 : vector<1x16x128xf32> to vector<16x128xf32>
    %50 = vector.shape_cast %47 : vector<16x128xf32> to vector<1x16x128xf32>
    tpu.vector_store %arg2[%c5, %c0_25, %c0_26], %50 {strides = array<i32>} : memref<9x16x128xf32, #tpu.memory_space<vmem>>, vector<1x16x128xf32>,
    %51 = arith.addf %17, %19 : vector<16x128xf32>
    %cst_27 = arith.constant 5.000000e-01 : f32
    %52 = vector.broadcast %cst_27 : f32 to vector<16x128xf32>
    %53 = arith.mulf %52, %51 : vector<16x128xf32>
    %54 = arith.subf %18, %53 : vector<16x128xf32>
    %cst_28 = arith.constant 2.23606801 : f32
    %55 = vector.broadcast %cst_28 : f32 to vector<16x128xf32>
    %56 = arith.mulf %55, %54 : vector<16x128xf32>
    %c6 = arith.constant 6 : index
    %c0_29 = arith.constant 0 : index
    %c0_30 = arith.constant 0 : index
    %57 = vector.load %arg2[%c6, %c0_29, %c0_30] : memref<9x16x128xf32, #tpu.memory_space<vmem>>, vector<1x16x128xf32>
    %58 = vector.shape_cast %57 : vector<1x16x128xf32> to vector<16x128xf32>
    %59 = vector.shape_cast %56 : vector<16x128xf32> to vector<1x16x128xf32>
    tpu.vector_store %arg2[%c6, %c0_29, %c0_30], %59 {strides = array<i32>} : memref<9x16x128xf32, #tpu.memory_space<vmem>>, vector<1x16x128xf32>,
    %60 = arith.mulf %15, %16 : vector<16x128xf32>
    %cst_31 = arith.constant 3.87298346 : f32
    %61 = vector.broadcast %cst_31 : f32 to vector<16x128xf32>
    %62 = arith.mulf %61, %60 : vector<16x128xf32>
    %c7 = arith.constant 7 : index
    %c0_32 = arith.constant 0 : index
    %c0_33 = arith.constant 0 : index
    %63 = vector.load %arg2[%c7, %c0_32, %c0_33] : memref<9x16x128xf32, #tpu.memory_space<vmem>>, vector<1x16x128xf32>
    %64 = vector.shape_cast %63 : vector<1x16x128xf32> to vector<16x128xf32>
    %65 = vector.shape_cast %62 : vector<16x128xf32> to vector<1x16x128xf32>
    tpu.vector_store %arg2[%c7, %c0_32, %c0_33], %65 {strides = array<i32>} : memref<9x16x128xf32, #tpu.memory_space<vmem>>, vector<1x16x128xf32>,
    %66 = arith.subf %19, %17 : vector<16x128xf32>
    %cst_34 = arith.constant 1.93649173 : f32
    %67 = vector.broadcast %cst_34 : f32 to vector<16x128xf32>
    %68 = arith.mulf %67, %66 : vector<16x128xf32>
    %c8 = arith.constant 8 : index
    %c0_35 = arith.constant 0 : index
    %c0_36 = arith.constant 0 : index
    %69 = vector.load %arg2[%c8, %c0_35, %c0_36] : memref<9x16x128xf32, #tpu.memory_space<vmem>>, vector<1x16x128xf32>
    %70 = vector.shape_cast %69 : vector<1x16x128xf32> to vector<16x128xf32>
    %71 = vector.shape_cast %68 : vector<16x128xf32> to vector<1x16x128xf32>
    tpu.vector_store %arg2[%c8, %c0_35, %c0_36], %71 {strides = array<i32>} : memref<9x16x128xf32, #tpu.memory_space<vmem>>, vector<1x16x128xf32>,
    return
  }
  func.func @transform_0(%arg0: i32) -> (i32, i32, i32) {
    %c0_i32 = arith.constant 0 : i32
    %c0_i32_0 = arith.constant 0 : i32
    %c0_i32_1 = arith.constant 0 : i32
    return %c0_i32, %arg0, %c0_i32_0 : i32, i32, i32
  }
  func.func @transform_1(%arg0: i32) -> (i32, i32, i32) {
    %c0_i32 = arith.constant 0 : i32
    %c0_i32_0 = arith.constant 0 : i32
    %c0_i32_1 = arith.constant 0 : i32
    return %c0_i32, %arg0, %c0_i32_0 : i32, i32, i32
  }
}

</mosaic_0001>

<llo_original>
// kernel: tpu_custom_call.1
$region0: #{tpu_custom_call.1}
  #allocation0 [shape = 'u32[]', space=smem, size = 0x4, offset = 0x4, fixed_abs, tag = 'smem constant byte address 0x4 - core index']
  #allocation1 [shape = 'u32[144,128]{1,0:T(1,128)}', space=vmem, size = 0x12000, scoped, tag = 'internal scratch']
  #allocation6 [shape = 's32[]', space=sflag, size = 0x4, offset = 0, fixed_abs, tag = 'sflag constant byte address 0x0 - dummy sync flag']
  #allocation8 [shape = 's32[]', space=sflag, size = 0x4, offset = 0, fixed_abs, tag = 'sflag constant byte address 0x0 - dummy sync flag']
  %s0 = inlined_call_operand.hbm [shape: f32[3,24,128], index: 0, kind: input, shape index: {}]
  %s1 = inlined_call_operand.hbm [shape: f32[9,24,128], index: 1, kind: output, shape index: {}]
  %s2 = sld [smem:[#allocation0]]
  $region41: #{tpu_custom_call.1} parent=0
    _
  %s4 = ssub.s32 1, %s2
  %s5 = scalar_select 0, %s4, %s2
  $region1: #{tpu_custom_call.1} parent=0
    #allocation2 [shape = 'u8[49152]{0}', space=vmem, size = 0xc000, scoped, tag = 'input window, operand 0']
    #allocation3 [shape = 's32[2]{0}', space=sflag, size = 0x8, scoped, tag = 'scoped memory for tpu_custom_call.1']
    #allocation4 [shape = 's32[2]{0}', space=sflag, size = 0x8, scoped, tag = 'scoped memory for tpu_custom_call.1']
    #allocation5 [shape = 'u8[147456]{0}', space=vmem, size = 0x24000, scoped, tag = 'output window, operand 0']
    %6 = vsyncpa [#allocation3], 0
    %s7 = scalar_lea.sflag [#allocation3], 1
    %8 = vsyncpa %s7, 0
    %9 = vsyncpa [#allocation4], 0
    %s10 = scalar_lea.sflag [#allocation4], 1
    %11 = vsyncpa %s10, 0
    loop: start=0, step=1, limit=4
    $region2: #{tpu_custom_call.1} parent=1 // loop_pre_header
      _
    $region3: #{tpu_custom_call.1} parent=1 // loop_header
      %s13 = sphi 0, %s17
      %p14 = scmp.ge.s32.totalorder %s13, 4
      %s23 = sphi 0, %s25
      %s26 = sphi 0, %s23
      %s27 = sphi 0, %s26
      %s43 = sphi 0, %s27
      %s49 = sphi 0, %s51
      %s52 = sphi 0, %s49
      %s53 = sphi 0, %s52
      %s69 = sphi 0, %s53
    $region4: #{tpu_custom_call.1} parent=1 // loop_header_branch
      %16 = sbr.rel (%p14) target = $region8
    $region5: #{tpu_custom_call.1} parent=1 // loop_body
      %s18 = ssub.s32 %s13, 1
      %s19 = ssub.s32 %s13, 2
      %s20 = sadd.s32 %s13, 1
      %s21 = ssub.s32 %s13, %s20
      %p22 = scmp.eq.s32.totalorder %s21, 0
      %s24 = sadd.s32 %s23, 1
      %s25 = scalar_select %p22, %s23, %s24
      %p28 = pneg %p22
      %p29 = scmp.eq.s32.totalorder %s13, 1
      %p30 = por %p28, %p29
      %p31 = scmp.ne.s32.totalorder %s23, %s26
      %p32 = scmp.eq.s32.totalorder %s13, 0
      %p33 = por %p31, %p32
      %p34 = scmp.ne.s32.totalorder %s23, %s26
      %p35 = scmp.eq.s32.totalorder %s18, 1
      %p36 = por %p34, %p35
      %p37 = scmp.ne.s32.totalorder %s26, %s27
      %p38 = scmp.eq.s32.totalorder %s18, 0
      %p39 = por %p37, %p38
      %p40 = scmp.ne.s32.totalorder %s26, %s27
      %p41 = scmp.eq.s32.totalorder %s19, 1
      %p42 = por %p40, %p41
      %p44 = scmp.ne.s32.totalorder %s27, %s43
      %p45 = scmp.eq.s32.totalorder %s19, 0
      %p46 = por %p44, %p45
      %s47 = ssub.s32 %s13, %s20
      %p48 = scmp.eq.s32.totalorder %s47, 0
      %s50 = sadd.s32 %s49, 1
      %s51 = scalar_select %p48, %s49, %s50
      %p54 = pneg %p48
      %p55 = scmp.eq.s32.totalorder %s13, 1
      %p56 = por %p54, %p55
      %p57 = scmp.ne.s32.totalorder %s49, %s52
      %p58 = scmp.eq.s32.totalorder %s13, 0
      %p59 = por %p57, %p58
      %p60 = scmp.ne.s32.totalorder %s49, %s52
      %p61 = scmp.eq.s32.totalorder %s18, 1
      %p62 = por %p60, %p61
      %p63 = scmp.ne.s32.totalorder %s52, %s53
      %p64 = scmp.eq.s32.totalorder %s18, 0
      %p65 = por %p63, %p64
      %p66 = scmp.ne.s32.totalorder %s52, %s53
      %p67 = scmp.eq.s32.totalorder %s19, 1
      %p68 = por %p66, %p67
      %p70 = scmp.ne.s32.totalorder %s53, %s69
      %p71 = scmp.eq.s32.totalorder %s19, 0
      %p72 = por %p70, %p71
      %p73 = scmp.le.s32.totalorder 1, %s13
      %p74 = scmp.lt.s32.totalorder %s13, 3
      %p75 = pnand %p73, %p74
      %p76 = pneg %p75
      // Predicated region
      $region9: #{tpu_custom_call.1} parent=5 // pred_check
        _
      $region10: #{tpu_custom_call.1} parent=5 // pred_check_branch
        %78 = sbr.rel (%p75) target = $region12
      $region11: #{tpu_custom_call.1} parent=5 // pred_region
        %s79 = ssub.s32 %s13, 1
      $region12: #{tpu_custom_call.1} parent=5 // pred_fallthru
        _
      %p80 = scmp.lt.s32.totalorder %s13, 2
      // Predicated region
      $region13: #{tpu_custom_call.1} parent=5 // pred_check
        %p81 = pneg %p80
      $region14: #{tpu_custom_call.1} parent=5 // pred_check_branch
        %83 = sbr.rel (%p81) target = $region16
      $region15: #{tpu_custom_call.1} parent=5 // pred_region
        // Predicated region
        $region17: #{tpu_custom_call.1} parent=15 // pred_check
          %p84 = pneg %p33
        $region18: #{tpu_custom_call.1} parent=15 // pred_check_branch
          %86 = sbr.rel (%p84) target = $region20
        $region19: #{tpu_custom_call.1} parent=15 // pred_region
          #allocation7 [shape = 'u32[6]{0}', space=smem, size = 0x18, scoped, tag = 'DMA stride descriptor']
          %s87 = sand.u32 %s23, 1
          %s88 = scalar_lea.sflag [#allocation3], %s87
          %s89 = sand.u32 %s23, 1
          %s90 = smul.addr %s89, 48
          %s91 = scalar_lea.vmem [#allocation2], %s90
          %s92 = smul.u32 2, %s13
          %s93 = ssub.s32 3, %s92
          %p94 = scmp.lt.s32.totalorder %s93, 2
          %s95 = scalar_select %p94, %s93, 2
          %s96 = smul.u32 384, %s95
          %s98 = ssub.s32 768, %s96
          %99 = vsyncadd %s88, %s98
          %p100 = scmp.ne.s32.totalorder 0, %s96
          %s101 = smul.addr %s92, 128
          %s102 = scalar_lea.hbm %s0, %s101
          %s103 = smul.u32 8, %s95
          %s104 = smul.u32 %s103, 3
          %s106 = sshll.u32 1, 14
          %s107 = sxor.u32 4294967295, %s106
          %s109 = sld [smem:[#allocation0]]
          %s110 = sadd.s32 2, %s109
          %s112 = sshll.u32 7, 26
          %s113 = sxor.u32 4294967295, %s112
          %s114 = sand.u32 0, %s113
          %s115 = sshll.u32 %s110, 26
          %s116 = sor.u32 %s114, %s115
          %s117 = sshll.u32 %s91, 4
          %s118 = int_to_ptr.vmem [resolvable:$true] %s117
          %s119 = sshll.u32 %s104, 4
          %124 = sst [smem:[#allocation7]] 384
          %s125 = scalar_lea.smem [#allocation7], 1
          %126 = sst [smem:[%s125]] 256
          %s127 = scalar_lea.smem [#allocation7], 2
          %128 = sst [smem:[%s127]] %s95
          %s129 = scalar_lea.smem [#allocation7], 3
          %130 = sst [smem:[%s129]] 128
          %s131 = scalar_lea.smem [#allocation7], 4
          %132 = sst [smem:[%s131]] 128
          %s133 = scalar_lea.smem [#allocation7], 5
          %134 = sst [smem:[%s133]] 8
          %136 = dma.general (%p100), %s102, %s119, %s118, %s88, [#allocation6], [#allocation7], %s116, 0
        $region20: #{tpu_custom_call.1} parent=15 // pred_fallthru
          _
      $region16: #{tpu_custom_call.1} parent=5 // pred_fallthru
        _
      %p137 = scmp.le.s32.totalorder 1, %s13
      %p138 = scmp.lt.s32.totalorder %s13, 3
      %p139 = pnand %p137, %p138
      %p140 = pneg %p139
      // Predicated region
      $region21: #{tpu_custom_call.1} parent=5 // pred_check
        _
      $region22: #{tpu_custom_call.1} parent=5 // pred_check_branch
        %142 = sbr.rel (%p139) target = $region24
      $region23: #{tpu_custom_call.1} parent=5 // pred_region
        %s143 = ssub.s32 %s13, 1
        %s144 = sand.u32 %s26, 1
        %s145 = scalar_lea.sflag [#allocation3], %s144
        %s146 = sand.u32 %s26, 1
        %s147 = smul.addr %s146, 48
        %s148 = scalar_lea.vmem [#allocation2], %s147
        // Predicated region
        $region25: #{tpu_custom_call.1} parent=23 // pred_check
          %p149 = pneg %p39
        $region26: #{tpu_custom_call.1} parent=23 // pred_check_branch
          %151 = sbr.rel (%p149) target = $region28
        $region27: #{tpu_custom_call.1} parent=23 // pred_region
          %152 = dma.done %s145, 768
        $region28: #{tpu_custom_call.1} parent=23 // pred_fallthru
          _
        %s153 = sand.u32 %s26, 1
        %s154 = scalar_lea.sflag [#allocation3], %s153
        %s155 = sand.u32 %s26, 1
        %s156 = smul.addr %s155, 48
        %s157 = scalar_lea.vmem [#allocation2], %s156
        %p158 = pneg %p39
        %p159 = pneg %p36
        %p160 = pneg %p65
        %p161 = pneg %p62
        %s162 = sand.u32 %s52, 1
        %s163 = scalar_lea.sflag [#allocation4], %s162
        %s164 = sand.u32 %s52, 1
        %s165 = smul.addr %s164, 144
        %s166 = scalar_lea.vmem [#allocation5], %s165
        %s167 = smul.u32 2, %s18
        %s168 = ssub.s32 3, %s167
        %p169 = scmp.lt.s32.totalorder %s168, 2
        %s170 = scalar_select %p169, %s168, 2
        %s171 = smul.u32 384, %s170
        %s172 = smul.u32 2, %s18
        %s173 = ssub.s32 3, %s172
        %p174 = scmp.lt.s32.totalorder %s173, 2
        %s175 = scalar_select %p174, %s173, 2
        %s176 = smul.u32 1152, %s175
        %v177 = vld [vmem:[%s148] sm:$0xff]
        %v178 = vld [vmem:[%s148 + $0x8] sm:$0xff]
        %s179 = scalar_lea.vmem %s148, 16 [#allocation2]
        %v180 = vld [vmem:[%s179] sm:$0xff]
        %v181 = vld [vmem:[%s179 + $0x8] sm:$0xff]
        %s182 = scalar_lea.vmem %s148, 32 [#allocation2]
        %v183 = vld [vmem:[%s182] sm:$0xff]
        %v184 = vld [vmem:[%s182 + $0x8] sm:$0xff]
        %v185 = vmul.f32 %v177, %v177
        %v186 = vmul.f32 %v178, %v178
        %v187 = vmul.f32 %v180, %v180
        %v188 = vmul.f32 %v181, %v181
        %v189 = vadd.f32 %v185, %v187
        %v190 = vadd.f32 %v186, %v188
        %v191 = vmul.f32 %v183, %v183
        %v192 = vmul.f32 %v184, %v184
        %v193 = vadd.f32 %v189, %v191
        %v194 = vadd.f32 %v190, %v192
        %v195 = vmax.f32 %v193, 1e-24
        %v196 = vmax.f32 %v194, 1e-24
        %v197 = vrsqrt.pop %v195
        %v198 = vrsqrt.pop %v196
        %v199 = vmul.f32 %v177, %v197
        %v200 = vmul.f32 %v178, %v198
        %v201 = vmul.f32 %v180, %v197
        %v202 = vmul.f32 %v181, %v198
        %v203 = vmul.f32 %v183, %v197
        %v204 = vmul.f32 %v184, %v198
        %v205 = vmul.f32 %v199, %v199
        %v206 = vmul.f32 %v200, %v200
        %v207 = vmul.f32 %v201, %v201
        %v208 = vmul.f32 %v202, %v202
        %v209 = vmul.f32 %v203, %v203
        %v210 = vmul.f32 %v204, %v204
        %211 = vst [vmem:[%s166] sm:$0xff] 1.0
        %212 = vst [vmem:[%s166 + $0x8] sm:$0xff] 1.0
        %v213 = vmul.f32 %v199, 1.7320508
        %v214 = vmul.f32 %v200, 1.7320508
        %s215 = scalar_lea.vmem %s166, 16 [#allocation5]
        %216 = vst [vmem:[%s215] sm:$0xff] %v213
        %217 = vst [vmem:[%s215 + $0x8] sm:$0xff] %v214
        %v218 = vmul.f32 %v201, 1.7320508
        %v219 = vmul.f32 %v202, 1.7320508
        %s220 = scalar_lea.vmem %s166, 32 [#allocation5]
        %221 = vst [vmem:[%s220] sm:$0xff] %v218
        %222 = vst [vmem:[%s220 + $0x8] sm:$0xff] %v219
        %v223 = vmul.f32 %v203, 1.7320508
        %v224 = vmul.f32 %v204, 1.7320508
        %s225 = scalar_lea.vmem %s166, 48 [#allocation5]
        %226 = vst [vmem:[%s225] sm:$0xff] %v223
        %227 = vst [vmem:[%s225 + $0x8] sm:$0xff] %v224
        %v228 = vmul.f32 %v199, %v203
        %v229 = vmul.f32 %v200, %v204
        %v230 = vmul.f32 %v228, 3.8729835
        %v231 = vmul.f32 %v229, 3.8729835
        %s232 = scalar_lea.vmem %s166, 64 [#allocation5]
        %233 = vst [vmem:[%s232] sm:$0xff] %v230
        %234 = vst [vmem:[%s232 + $0x8] sm:$0xff] %v231
        %v235 = vmul.f32 %v199, %v201
        %v236 = vmul.f32 %v200, %v202
        %v237 = vmul.f32 %v235, 3.8729835
        %v238 = vmul.f32 %v236, 3.8729835
        %s239 = scalar_lea.vmem %s166, 80 [#allocation5]
        %240 = vst [vmem:[%s239] sm:$0xff] %v237
        %241 = vst [vmem:[%s239 + $0x8] sm:$0xff] %v238
        %v242 = vadd.f32 %v205, %v209
        %v243 = vadd.f32 %v206, %v210
        %v244 = vmul.f32 %v242, 0.5
        %v245 = vmul.f32 %v243, 0.5
        %v246 = vsub.f32 %v207, %v244
        %v247 = vsub.f32 %v208, %v245
        %v248 = vmul.f32 %v246, 2.236068
        %v249 = vmul.f32 %v247, 2.236068
        %s250 = scalar_lea.vmem %s166, 96 [#allocation5]
        %251 = vst [vmem:[%s250] sm:$0xff] %v248
        %252 = vst [vmem:[%s250 + $0x8] sm:$0xff] %v249
        %v253 = vmul.f32 %v201, %v203
        %v254 = vmul.f32 %v202, %v204
        %v255 = vmul.f32 %v253, 3.8729835
        %v256 = vmul.f32 %v254, 3.8729835
        %s257 = scalar_lea.vmem %s166, 112 [#allocation5]
        %258 = vst [vmem:[%s257] sm:$0xff] %v255
        %259 = vst [vmem:[%s257 + $0x8] sm:$0xff] %v256
        %v260 = vsub.f32 %v209, %v205
        %v261 = vsub.f32 %v210, %v206
        %v262 = vmul.f32 %v260, 1.9364917
        %v263 = vmul.f32 %v261, 1.9364917
        %s264 = scalar_lea.vmem %s166, 128 [#allocation5]
        %265 = vst [vmem:[%s264] sm:$0xff] %v262
        %266 = vst [vmem:[%s264 + $0x8] sm:$0xff] %v263
        %s267 = sand.u32 %s52, 1
        %s268 = scalar_lea.sflag [#allocation4], %s267
        %s269 = sand.u32 %s52, 1
        %s270 = smul.addr %s269, 144
        %s271 = scalar_lea.vmem [#allocation5], %s270
        // Predicated region
        $region29: #{tpu_custom_call.1} parent=23 // pred_check
          %p272 = pneg %p62
        $region30: #{tpu_custom_call.1} parent=23 // pred_check_branch
          %274 = sbr.rel (%p272) target = $region32
        $region31: #{tpu_custom_call.1} parent=23 // pred_region
          #allocation9 [shape = 'u32[6]{0}', space=smem, size = 0x18, scoped, tag = 'DMA stride descriptor']
          %s275 = smul.u32 2, %s18
          %s276 = ssub.s32 3, %s275
          %p277 = scmp.lt.s32.totalorder %s276, 2
          %s278 = scalar_select %p277, %s276, 2
          %s279 = smul.u32 1152, %s278
          %s281 = ssub.s32 2304, %s279
          %282 = vsyncadd %s268, %s281
          %p283 = scmp.ne.s32.totalorder 0, %s279
          %s284 = smul.addr %s275, 128
          %s285 = scalar_lea.hbm %s1, %s284
          %s286 = smul.u32 8, %s278
          %s287 = smul.u32 %s286, 9
          %s289 = sshll.u32 1, 14
          %s290 = sxor.u32 4294967295, %s289
          %s293 = sshll.u32 7, 18
          %s294 = sxor.u32 4294967295, %s293
          %s295 = sand.u32 0, %s294
          %s297 = sor.u32 %s295, 0
          %s299 = sshll.u32 3, 24
          %s300 = sxor.u32 4294967295, %s299
          %s301 = sand.u32 %s297, %s300
          %s303 = sor.u32 %s301, 0
          %s304 = sshll.u32 %s271, 4
          %s305 = int_to_ptr.vmem [resolvable:$true] %s304
          %s306 = sshll.u32 %s287, 4
          %311 = sst [smem:[#allocation9]] 256
          %s312 = scalar_lea.smem [#allocation9], 1
          %313 = sst [smem:[%s312]] 384
          %s314 = scalar_lea.smem [#allocation9], 2
          %315 = sst [smem:[%s314]] %s278
          %s316 = scalar_lea.smem [#allocation9], 3
          %317 = sst [smem:[%s316]] 128
          %s318 = scalar_lea.smem [#allocation9], 4
          %319 = sst [smem:[%s318]] 128
          %s320 = scalar_lea.smem [#allocation9], 5
          %321 = sst [smem:[%s320]] 8
          %323 = dma.general (%p283), %s305, %s306, %s285, %s268, [#allocation8], [#allocation9], %s303, 0
        $region32: #{tpu_custom_call.1} parent=23 // pred_fallthru
          _
      $region24: #{tpu_custom_call.1} parent=5 // pred_fallthru
        _
      %p324 = scmp.le.s32.totalorder 2, %s13
      // Predicated region
      $region33: #{tpu_custom_call.1} parent=5 // pred_check
        %p325 = pneg %p324
      $region34: #{tpu_custom_call.1} parent=5 // pred_check_branch
        %327 = sbr.rel (%p325) target = $region36
      $region35: #{tpu_custom_call.1} parent=5 // pred_region
        %s328 = ssub.s32 %s13, 2
        // Predicated region
        $region37: #{tpu_custom_call.1} parent=35 // pred_check
          %p329 = pneg %p68
        $region38: #{tpu_custom_call.1} parent=35 // pred_check_branch
          %331 = sbr.rel (%p329) target = $region40
        $region39: #{tpu_custom_call.1} parent=35 // pred_region
          %s332 = sand.u32 %s53, 1
          %s333 = scalar_lea.sflag [#allocation4], %s332
          %s334 = sand.u32 %s53, 1
          %s335 = smul.addr %s334, 144
          %s336 = scalar_lea.vmem [#allocation5], %s335
          %337 = dma.done %s333, 2304
        $region40: #{tpu_custom_call.1} parent=35 // pred_fallthru
          _
      $region36: #{tpu_custom_call.1} parent=5 // pred_fallthru
        _
    $region6: #{tpu_custom_call.1} parent=1 // loop_footer
      %s17 = sadd.s32 1, %s13
    $region7: #{tpu_custom_call.1} parent=1 // loop_footer_branch
      %12 = sbr.rel target = $region3
    $region8: #{tpu_custom_call.1} parent=1 // loop_exit
      _
    %338 = vsyncpa [#allocation3], 1
    %s339 = scalar_lea.sflag [#allocation3], 1
    %340 = vsyncpa %s339, 1
    %341 = vsyncpa [#allocation4], 1
    %s342 = scalar_lea.sflag [#allocation4], 1
    %343 = vsyncpa %s342, 1

</llo_original>
